<compile_context>
chip_gen: v5e
topology: v5e:2x2
jax: 0.10.0
libtpu: 0.0.40
codegen_flags: <defaults>
</compile_context>

<pallas_src>
import functools

import jax
import jax.numpy as jnp
from jax import lax
from jax.experimental import pallas as pl
from jax.experimental.pallas import tpu as pltpu


def deepfm_kernel(x_ref, embT_ref, fc_ref, w1_ref, b1_ref, w2_ref, b2_ref,
                  w3_ref, sbias_ref, out_ref):
    """One batch tile; batch is on the lane axis.

    x_ref    : (F, TB)     int32  feature indices for this batch tile
    embT_ref : (E, total)  f32    embedding table, transposed (resident)
    fc_ref   : (total, 1)  f32    first-order embedding table (resident)
    w1_ref   : (H1, F*E)   f32    PyTorch Linear layout (out, in)
    b1_ref   : (H1, 1)     f32
    w2_ref   : (H2, H1)    f32
    b2_ref   : (H2, 1)     f32
    w3_ref   : (H2, 1)     f32    last Linear weight as a column
    sbias_ref: (1, 1)      f32    SMEM scalar = fm bias + last Linear bias
    out_ref  : (1, TB)     f32    sigmoid(fm + mlp), lane-dense
    """
    F, TB = x_ref.shape
    E, total = embT_ref.shape

    x = x_ref[...]                                    # (F, TB) int32
    embT = embT_ref[...]                              # (E, total)
    row_iota = lax.broadcasted_iota(jnp.int32, (total, TB), 0)

    # ---- in-kernel embedding gather: one-hot @ table, per field (F static) ----
    e_fields = []                                     # each (E, TB)
    count = jnp.zeros((total, TB), jnp.float32)       # multiplicity of each row id
    for f in range(F):
        onehot = (row_iota == x[f:f + 1, :]).astype(jnp.float32)   # (total, TB)
        count = count + onehot
        e_fields.append(
            jnp.dot(embT, onehot, preferred_element_type=jnp.float32))

    # ---- FM part ----
    # first order: sum_f fc(x_f)  ==  column-weighted sum of the index counts
    fm_y = jnp.sum(fc_ref[...] * count, axis=0, keepdims=True)      # (1, TB)
    # second order: 0.5 * sum_e [ (sum_f e)^2 - sum_f e^2 ]
    sum_e = functools.reduce(lambda a, b: a + b, e_fields)          # (E, TB)
    sum_sq = functools.reduce(lambda a, b: a + b, [e * e for e in e_fields])
    fm_y = fm_y + 0.5 * jnp.sum(sum_e * sum_e - sum_sq, axis=0, keepdims=True)

    # ---- MLP part (transposed: columns are batch samples) ----
    h = jnp.concatenate(e_fields, axis=0)                           # (F*E, TB)
    h = jnp.dot(w1_ref[...], h, preferred_element_type=jnp.float32) + b1_ref[...]
    h = jnp.maximum(h, 0.0)                                         # ReLU
    # TODO(synk): nn.Dropout omitted (identity / inference mode).
    h = jnp.dot(w2_ref[...], h, preferred_element_type=jnp.float32) + b2_ref[...]
    h = jnp.maximum(h, 0.0)                                         # ReLU
    # single output unit -> VPU multiply + sublane reduce (avoid N=1 MXU pass)
    mlp_y = jnp.sum(h * w3_ref[...], axis=0, keepdims=True)         # (1, TB)

    # ---- combine ----
    out_ref[...] = jax.nn.sigmoid(fm_y + mlp_y + sbias_ref[0, 0])   # (1, TB)


def deepfm_forward(x, params, *, block_b=128):
    """x: (B, F) int32 indices. Returns y: (B,) float32."""
    emb = params["embedding"]                  # (total, E)
    fc = params["fc"]                          # (total, 1)
    w1, b1 = params["w1"], params["b1"]        # (H1, F*E), (H1,)
    w2, b2 = params["w2"], params["b2"]        # (H2, H1),  (H2,)
    w3, b3 = params["w3"], params["b3"]        # (1, H2),   (1,)

    B, F = x.shape
    total, E = emb.shape
    H1 = w1.shape[0]
    H2 = w2.shape[0]

    num_blocks = pl.cdiv(B, block_b)
    B_pad = num_blocks * block_b

    # Tiny one-time layout plumbing: batch on the lane axis, column biases,
    # transposed embedding table, fused scalar bias. Pad batch with index 0.
    x_t = jnp.zeros((F, B_pad), jnp.int32).at[:, :B].set(x.T.astype(jnp.int32))
    emb_t = emb.T                              # (E, total)
    b1c = b1.reshape(H1, 1)
    b2c = b2.reshape(H2, 1)
    w3c = w3.reshape(H2, 1)                    # (1, H2) -> (H2, 1)
    sbias = (params["bias"].reshape(()) + b3.reshape(())).reshape(1, 1)

    def resident(shape):
        return pl.BlockSpec(shape, lambda i: (0, 0))

    out = pl.pallas_call(
        deepfm_kernel,
        out_shape=jax.ShapeDtypeStruct((1, B_pad), jnp.float32),
        grid=(num_blocks,),
        in_specs=[
            pl.BlockSpec((F, block_b), lambda i: (0, i)),        # x (per tile)
            resident((E, total)),                                # embT
            resident((total, 1)),                                # fc
            resident((H1, F * E)),                               # w1
            resident((H1, 1)),                                   # b1
            resident((H2, H1)),                                  # w2
            resident((H2, 1)),                                   # b2
            resident((H2, 1)),                                   # w3 column
            pl.BlockSpec(memory_space=pltpu.MemorySpace.SMEM),   # scalar bias
        ],
        out_specs=pl.BlockSpec((1, block_b), lambda i: (0, i)),
        compiler_params=pltpu.CompilerParams(
            dimension_semantics=("parallel",)),
    )(x_t, emb_t, fc, w1, b1c, w2, b2c, w3c, sbias)
    return out[0, :B]


def init_params(key, input_dims, embedding_dim, mlp_dims):
    total = int(sum(input_dims))
    F = len(input_dims)
    flat_dim = F * embedding_dim
    dims = [flat_dim] + list(mlp_dims) + [1]

    n_linear = len(dims) - 1
    keys = jax.random.split(key, 2 + 2 * n_linear)
    params = {
        "bias": jnp.zeros((1,), jnp.float32),
        "embedding": jax.random.normal(keys[0], (total, embedding_dim), jnp.float32),
        "fc": jax.random.normal(keys[1], (total, 1), jnp.float32),
    }
    # Linear layers, PyTorch layout: weight (out, in), bias (out,),
    # init uniform(-1/sqrt(fan_in), 1/sqrt(fan_in)).
    names = [("w1", "b1"), ("w2", "b2"), ("w3", "b3")]
    for i, (wn, bn) in enumerate(names):
        fan_in, fan_out = dims[i], dims[i + 1]
        bound = 1.0 / (fan_in ** 0.5)
        params[wn] = jax.random.uniform(keys[2 + 2 * i], (fan_out, fan_in),
                                        jnp.float32, -bound, bound)
        params[bn] = jax.random.uniform(keys[3 + 2 * i], (fan_out,),
                                        jnp.float32, -bound, bound)
    return params


def deepfm_reference(x, params):
    emb = jnp.take(params["embedding"], x, axis=0)              # (B, F, E)
    fc = jnp.take(params["fc"], x, axis=0)[..., 0]              # (B, F)
    fm_y = params["bias"] + jnp.sum(fc, axis=1, keepdims=True)  # (B, 1)
    sq_sum = jnp.sum(emb, axis=1) ** 2
    sum_sq = jnp.sum(emb ** 2, axis=1)
    fm_y = fm_y + 0.5 * jnp.sum(sq_sum - sum_sq, axis=1, keepdims=True)
    h = emb.reshape(emb.shape[0], -1)
    h = jnp.maximum(h @ params["w1"].T + params["b1"], 0.0)
    h = jnp.maximum(h @ params["w2"].T + params["b2"], 0.0)
    mlp_y = h @ params["w3"].T + params["b3"]
    return jax.nn.sigmoid(fm_y[:, 0] + mlp_y[:, 0])


if __name__ == "__main__":
    input_dims = (10, 20, 30)      # 3 fields, combined table of 60 rows
    embedding_dim = 16
    mlp_dims = (32, 16)
    B = 8

    key = jax.random.PRNGKey(0)
    k_param, k_x = jax.random.split(key)
    params = init_params(k_param, input_dims, embedding_dim, mlp_dims)

    total = int(sum(input_dims))
    x = jax.random.randint(k_x, (B, len(input_dims)), 0, total, dtype=jnp.int32)

    y = jax.jit(deepfm_forward)(x, params)
    y = jax.block_until_ready(y)

    y_ref = deepfm_reference(x, params)
    assert y.shape == (B,)
    assert jnp.allclose(y, y_ref, atol=1e-5, rtol=1e-5), (y, y_ref)

    print("KERNEL_OK")
</pallas_src>

<mosaic_0001>
module attributes {stable_mosaic.version = 11 : i64} {
  func.func @deepfm_kernel(%arg0: i32, %arg1: memref<3x128xi32, #tpu.memory_space<vmem>>, %arg2: memref<16x60xf32, #tpu.memory_space<vmem>>, %arg3: memref<60x1xf32, #tpu.memory_space<vmem>>, %arg4: memref<32x48xf32, #tpu.memory_space<vmem>>, %arg5: memref<32x1xf32, #tpu.memory_space<vmem>>, %arg6: memref<16x32xf32, #tpu.memory_space<vmem>>, %arg7: memref<16x1xf32, #tpu.memory_space<vmem>>, %arg8: memref<16x1xf32, #tpu.memory_space<vmem>>, %arg9: memref<1x1xf32, #tpu.memory_space<smem>>, %arg10: memref<1x128xf32, #tpu.memory_space<vmem>>) attributes {dimension_semantics = [#tpu.dimension_semantics<parallel>], iteration_bounds = array<i64: 1>, scalar_prefetch = 0 : i64, scratch_operands = 0 : i64, tpu.core_type = #tpu.core_type<tc>, window_params = [{transform_indices = @transform_0, window_bounds = array<i64: 3, 128>}, {pipeline_mode = #tpu.pipeline_mode<synchronous>, transform_indices = @transform_1, window_bounds = array<i64: 16, 60>}, {pipeline_mode = #tpu.pipeline_mode<synchronous>, transform_indices = @transform_2, window_bounds = array<i64: 60, 1>}, {pipeline_mode = #tpu.pipeline_mode<synchronous>, transform_indices = @transform_3, window_bounds = array<i64: 32, 48>}, {pipeline_mode = #tpu.pipeline_mode<synchronous>, transform_indices = @transform_4, window_bounds = array<i64: 32, 1>}, {pipeline_mode = #tpu.pipeline_mode<synchronous>, transform_indices = @transform_5, window_bounds = array<i64: 16, 32>}, {pipeline_mode = #tpu.pipeline_mode<synchronous>, transform_indices = @transform_6, window_bounds = array<i64: 16, 1>}, {pipeline_mode = #tpu.pipeline_mode<synchronous>, transform_indices = @transform_7, window_bounds = array<i64: 16, 1>}, {transform_indices = @transform_8, window_bounds = array<i64: 1, 1>}, {transform_indices = @transform_9, window_bounds = array<i64: 1, 128>}]} {
    %c0 = arith.constant 0 : index
    %c0_0 = arith.constant 0 : index
    %0 = vector.load %arg1[%c0, %c0_0] : memref<3x128xi32, #tpu.memory_space<vmem>>, vector<3x128xi32>
    %c0_1 = arith.constant 0 : index
    %c0_2 = arith.constant 0 : index
    %1 = vector.load %arg2[%c0_1, %c0_2] : memref<16x60xf32, #tpu.memory_space<vmem>>, vector<16x60xf32>
    %2 = tpu.iota {dimensions = array<i32: 0>} : vector<60x128xi32>
    %cst = arith.constant 0.000000e+00 : f32
    %3 = vector.broadcast %cst : f32 to vector<60x128xf32>
    %4 = vector.extract_strided_slice %0 {offsets = [0, 0], sizes = [1, 128], strides = [1, 1]} : vector<3x128xi32> to vector<1x128xi32>
    %5 = vector.broadcast %4 : vector<1x128xi32> to vector<60x128xi32>
    %6 = arith.cmpi eq, %2, %5 : vector<60x128xi32>
    %7 = arith.extui %6 : vector<60x128xi1> to vector<60x128xi32>
    %8 = arith.sitofp %7 : vector<60x128xi32> to vector<60x128xf32>
    %9 = arith.addf %3, %8 : vector<60x128xf32>
    %cst_3 = arith.constant dense<0.000000e+00> : vector<16x128xf32>
    %10 = tpu.matmul %1, %8, %cst_3 {dimension_numbers = #tpu.dot_dimension_numbers<[1], [0], [0], [1], [0, 0, 1, 1], [], []>} : vector<16x60xf32>, vector<60x128xf32>, vector<16x128xf32> -> vector<16x128xf32>
    %11 = vector.extract_strided_slice %0 {offsets = [1, 0], sizes = [1, 128], strides = [1, 1]} : vector<3x128xi32> to vector<1x128xi32>
    %12 = vector.broadcast %11 : vector<1x128xi32> to vector<60x128xi32>
    %13 = arith.cmpi eq, %2, %12 : vector<60x128xi32>
    %14 = arith.extui %13 : vector<60x128xi1> to vector<60x128xi32>
    %15 = arith.sitofp %14 : vector<60x128xi32> to vector<60x128xf32>
    %16 = arith.addf %9, %15 : vector<60x128xf32>
    %cst_4 = arith.constant dense<0.000000e+00> : vector<16x128xf32>
    %17 = tpu.matmul %1, %15, %cst_4 {dimension_numbers = #tpu.dot_dimension_numbers<[1], [0], [0], [1], [0, 0, 1, 1], [], []>} : vector<16x60xf32>, vector<60x128xf32>, vector<16x128xf32> -> vector<16x128xf32>
    %18 = vector.extract_strided_slice %0 {offsets = [2, 0], sizes = [1, 128], strides = [1, 1]} : vector<3x128xi32> to vector<1x128xi32>
    %19 = vector.broadcast %18 : vector<1x128xi32> to vector<60x128xi32>
    %20 = arith.cmpi eq, %2, %19 : vector<60x128xi32>
    %21 = arith.extui %20 : vector<60x128xi1> to vector<60x128xi32>
    %22 = arith.sitofp %21 : vector<60x128xi32> to vector<60x128xf32>
    %23 = arith.addf %16, %22 : vector<60x128xf32>
    %cst_5 = arith.constant dense<0.000000e+00> : vector<16x128xf32>
    %24 = tpu.matmul %1, %22, %cst_5 {dimension_numbers = #tpu.dot_dimension_numbers<[1], [0], [0], [1], [0, 0, 1, 1], [], []>} : vector<16x60xf32>, vector<60x128xf32>, vector<16x128xf32> -> vector<16x128xf32>
    %c0_6 = arith.constant 0 : index
    %c0_7 = arith.constant 0 : index
    %25 = vector.load %arg3[%c0_6, %c0_7] : memref<60x1xf32, #tpu.memory_space<vmem>>, vector<60x1xf32>
    %26 = vector.broadcast %25 : vector<60x1xf32> to vector<60x128xf32>
    %27 = arith.mulf %26, %23 : vector<60x128xf32>
    %cst_8 = arith.constant dense<0.000000e+00> : vector<128xf32>
    %28 = vector.multi_reduction <add>, %27, %cst_8 [0] : vector<60x128xf32> to vector<128xf32>
    %29 = vector.shape_cast %28 : vector<128xf32> to vector<1x128xf32>
    %30 = arith.addf %10, %17 : vector<16x128xf32>
    %31 = arith.addf %30, %24 : vector<16x128xf32>
    %32 = arith.mulf %10, %10 : vector<16x128xf32>
    %33 = arith.mulf %17, %17 : vector<16x128xf32>
    %34 = arith.mulf %24, %24 : vector<16x128xf32>
    %35 = arith.addf %32, %33 : vector<16x128xf32>
    %36 = arith.addf %35, %34 : vector<16x128xf32>
    %37 = arith.mulf %31, %31 : vector<16x128xf32>
    %38 = arith.subf %37, %36 : vector<16x128xf32>
    %cst_9 = arith.constant dense<0.000000e+00> : vector<128xf32>
    %39 = vector.multi_reduction <add>, %38, %cst_9 [0] : vector<16x128xf32> to vector<128xf32>
    %40 = vector.shape_cast %39 : vector<128xf32> to vector<1x128xf32>
    %cst_10 = arith.constant 5.000000e-01 : f32
    %41 = vector.broadcast %cst_10 : f32 to vector<1x128xf32>
    %42 = arith.mulf %41, %40 : vector<1x128xf32>
    %43 = arith.addf %29, %42 : vector<1x128xf32>
    %44 = tpu.concatenate %10, %17, %24 in 0 : vector<16x128xf32>, vector<16x128xf32>, vector<16x128xf32> -> vector<48x128xf32>
    %c0_11 = arith.constant 0 : index
    %c0_12 = arith.constant 0 : index
    %45 = vector.load %arg4[%c0_11, %c0_12] : memref<32x48xf32, #tpu.memory_space<vmem>>, vector<32x48xf32>
    %cst_13 = arith.constant dense<0.000000e+00> : vector<32x128xf32>
    %46 = tpu.matmul %45, %44, %cst_13 {dimension_numbers = #tpu.dot_dimension_numbers<[1], [0], [0], [1], [0, 0, 1, 1], [], []>} : vector<32x48xf32>, vector<48x128xf32>, vector<32x128xf32> -> vector<32x128xf32>
    %c0_14 = arith.constant 0 : index
    %c0_15 = arith.constant 0 : index
    %47 = vector.load %arg5[%c0_14, %c0_15] : memref<32x1xf32, #tpu.memory_space<vmem>>, vector<32x1xf32>
    %48 = vector.broadcast %47 : vector<32x1xf32> to vector<32x128xf32>
    %49 = arith.addf %46, %48 : vector<32x128xf32>
    %cst_16 = arith.constant 0.000000e+00 : f32
    %50 = vector.broadcast %cst_16 : f32 to vector<32x128xf32>
    %51 = arith.maximumf %49, %50 : vector<32x128xf32>
    %c0_17 = arith.constant 0 : index
    %c0_18 = arith.constant 0 : index
    %52 = vector.load %arg6[%c0_17, %c0_18] : memref<16x32xf32, #tpu.memory_space<vmem>>, vector<16x32xf32>
    %cst_19 = arith.constant dense<0.000000e+00> : vector<16x128xf32>
    %53 = tpu.matmul %52, %51, %cst_19 {dimension_numbers = #tpu.dot_dimension_numbers<[1], [0], [0], [1], [0, 0, 1, 1], [], []>} : vector<16x32xf32>, vector<32x128xf32>, vector<16x128xf32> -> vector<16x128xf32>
    %c0_20 = arith.constant 0 : index
    %c0_21 = arith.constant 0 : index
    %54 = vector.load %arg7[%c0_20, %c0_21] : memref<16x1xf32, #tpu.memory_space<vmem>>, vector<16x1xf32>
    %55 = vector.broadcast %54 : vector<16x1xf32> to vector<16x128xf32>
    %56 = arith.addf %53, %55 : vector<16x128xf32>
    %cst_22 = arith.constant 0.000000e+00 : f32
    %57 = vector.broadcast %cst_22 : f32 to vector<16x128xf32>
    %58 = arith.maximumf %56, %57 : vector<16x128xf32>
    %c0_23 = arith.constant 0 : index
    %c0_24 = arith.constant 0 : index
    %59 = vector.load %arg8[%c0_23, %c0_24] : memref<16x1xf32, #tpu.memory_space<vmem>>, vector<16x1xf32>
    %60 = vector.broadcast %59 : vector<16x1xf32> to vector<16x128xf32>
    %61 = arith.mulf %58, %60 : vector<16x128xf32>
    %cst_25 = arith.constant dense<0.000000e+00> : vector<128xf32>
    %62 = vector.multi_reduction <add>, %61, %cst_25 [0] : vector<16x128xf32> to vector<128xf32>
    %63 = vector.shape_cast %62 : vector<128xf32> to vector<1x128xf32>
    %64 = arith.addf %43, %63 : vector<1x128xf32>
    %c0_26 = arith.constant 0 : index
    %c0_27 = arith.constant 0 : index
    %65 = memref.load %arg9[%c0_26, %c0_27] : memref<1x1xf32, #tpu.memory_space<smem>>
    %66 = vector.broadcast %65 : f32 to vector<1x128xf32>
    %67 = arith.addf %64, %66 : vector<1x128xf32>
    %68 = arith.negf %67 : vector<1x128xf32>
    %69 = math.exp %68 : vector<1x128xf32>
    %cst_28 = arith.constant 1.000000e+00 : f32
    %70 = vector.broadcast %cst_28 : f32 to vector<1x128xf32>
    %71 = arith.addf %70, %69 : vector<1x128xf32>
    %72 = arith.divf %70, %71 : vector<1x128xf32>
    %c0_29 = arith.constant 0 : index
    %c0_30 = arith.constant 0 : index
    %73 = vector.load %arg10[%c0_29, %c0_30] : memref<1x128xf32, #tpu.memory_space<vmem>>, vector<1x128xf32>
    tpu.vector_store %arg10[%c0_29, %c0_30], %72 {strides = array<i32>} : memref<1x128xf32, #tpu.memory_space<vmem>>, vector<1x128xf32>,
    return
  }
  func.func @transform_0(%arg0: i32) -> (i32, i32) {
    %c0_i32 = arith.constant 0 : i32
    %c0_i32_0 = arith.constant 0 : i32
    return %c0_i32, %arg0 : i32, i32
  }
  func.func @transform_1(%arg0: i32) -> (i32, i32) {
    %c0_i32 = arith.constant 0 : i32
    %c0_i32_0 = arith.constant 0 : i32
    %c0_i32_1 = arith.constant 0 : i32
    return %c0_i32, %c0_i32_0 : i32, i32
  }
  func.func @transform_2(%arg0: i32) -> (i32, i32) {
    %c0_i32 = arith.constant 0 : i32
    %c0_i32_0 = arith.constant 0 : i32
    %c0_i32_1 = arith.constant 0 : i32
    return %c0_i32, %c0_i32_0 : i32, i32
  }
  func.func @transform_3(%arg0: i32) -> (i32, i32) {
    %c0_i32 = arith.constant 0 : i32
    %c0_i32_0 = arith.constant 0 : i32
    %c0_i32_1 = arith.constant 0 : i32
    return %c0_i32, %c0_i32_0 : i32, i32
  }
  func.func @transform_4(%arg0: i32) -> (i32, i32) {
    %c0_i32 = arith.constant 0 : i32
    %c0_i32_0 = arith.constant 0 : i32
    %c0_i32_1 = arith.constant 0 : i32
    return %c0_i32, %c0_i32_0 : i32, i32
  }
  func.func @transform_5(%arg0: i32) -> (i32, i32) {
    %c0_i32 = arith.constant 0 : i32
    %c0_i32_0 = arith.constant 0 : i32
    %c0_i32_1 = arith.constant 0 : i32
    return %c0_i32, %c0_i32_0 : i32, i32
  }
  func.func @transform_6(%arg0: i32) -> (i32, i32) {
    %c0_i32 = arith.constant 0 : i32
    %c0_i32_0 = arith.constant 0 : i32
    %c0_i32_1 = arith.constant 0 : i32
    return %c0_i32, %c0_i32_0 : i32, i32
  }
  func.func @transform_7(%arg0: i32) -> (i32, i32) {
    %c0_i32 = arith.constant 0 : i32
    %c0_i32_0 = arith.constant 0 : i32
    %c0_i32_1 = arith.constant 0 : i32
    return %c0_i32, %c0_i32_0 : i32, i32
  }
  func.func @transform_8(%arg0: i32) -> (i32, i32) {
    %c0_i32 = arith.constant 0 : i32
    %c0_i32_0 = arith.constant 0 : i32
    %c0_i32_1 = arith.constant 0 : i32
    return %c0_i32, %c0_i32_0 : i32, i32
  }
  func.func @transform_9(%arg0: i32) -> (i32, i32) {
    %c0_i32 = arith.constant 0 : i32
    %c0_i32_0 = arith.constant 0 : i32
    return %c0_i32, %arg0 : i32, i32
  }
}

</mosaic_0001>

<llo_original>
// kernel: deepfm_forward.1
$region0: #{deepfm_forward.1}
  #allocation0 [shape = 'u32[]', space=smem, size = 0x4, offset = 0x4, fixed_abs, tag = 'smem constant byte address 0x4 - core index']
  #allocation1 [shape = 'u32[72,128]{1,0:T(1,128)}', space=vmem, size = 0x9000, scoped, tag = 'internal scratch']
  #allocation2 [shape = 'f32[1,1]{1,0:T(1,128)S(6)}', space=smem, size = 0x200, scoped, tag = 'scoped memory for deepfm_forward.1']
  %s0 = inlined_call_operand.vmem [shape: s32[3,128], index: 0, kind: input, shape index: {}]
  %s1 = inlined_call_operand.vmem [shape: f32[16,60], index: 1, kind: input, shape index: {}]
  %s2 = inlined_call_operand.vmem [shape: f32[60,1], index: 2, kind: input, shape index: {}]
  %s3 = inlined_call_operand.vmem [shape: f32[32,48], index: 3, kind: input, shape index: {}]
  %s4 = inlined_call_operand.vmem [shape: f32[32,1], index: 4, kind: input, shape index: {}]
  %s5 = inlined_call_operand.vmem [shape: f32[16,32], index: 5, kind: input, shape index: {}]
  %s6 = inlined_call_operand.vmem [shape: f32[16,1], index: 6, kind: input, shape index: {}]
  %s7 = inlined_call_operand.vmem [shape: f32[16,1], index: 7, kind: input, shape index: {}]
  %s8 = inlined_call_operand.<no memory space> [shape: f32[1,1], index: 8, kind: input, shape index: {}]
  %s9 = inlined_call_operand.vmem [shape: f32[1,128], index: 9, kind: output, shape index: {}]
  %s10 = sld [smem:[#allocation0]]
  $region46: #{deepfm_forward.1} parent=0
    _
  %s12 = ssub.s32 1, %s10
  %s13 = scalar_select 0, %s12, %s10
  %14 = sst [smem:[#allocation2]] %s8
  // Predicated region
  $region2: #{deepfm_forward.1} parent=0 // pred_check
    _
  $region3: #{deepfm_forward.1} parent=0 // pred_check_branch
    %16 = sbr.rel (0) target = $region5
  $region4: #{deepfm_forward.1} parent=0 // pred_region
    _
  $region5: #{deepfm_forward.1} parent=0 // pred_fallthru
    _
  // Predicated region
  $region6: #{deepfm_forward.1} parent=0 // pred_check
    _
  $region7: #{deepfm_forward.1} parent=0 // pred_check_branch
    %18 = sbr.rel (0) target = $region9
  $region8: #{deepfm_forward.1} parent=0 // pred_region
    _
  $region9: #{deepfm_forward.1} parent=0 // pred_fallthru
    _
  // Predicated region
  $region10: #{deepfm_forward.1} parent=0 // pred_check
    _
  $region11: #{deepfm_forward.1} parent=0 // pred_check_branch
    %20 = sbr.rel (0) target = $region13
  $region12: #{deepfm_forward.1} parent=0 // pred_region
    _
  $region13: #{deepfm_forward.1} parent=0 // pred_fallthru
    _
  // Predicated region
  $region14: #{deepfm_forward.1} parent=0 // pred_check
    _
  $region15: #{deepfm_forward.1} parent=0 // pred_check_branch
    %22 = sbr.rel (0) target = $region17
  $region16: #{deepfm_forward.1} parent=0 // pred_region
    _
  $region17: #{deepfm_forward.1} parent=0 // pred_fallthru
    _
  // Predicated region
  $region18: #{deepfm_forward.1} parent=0 // pred_check
    _
  $region19: #{deepfm_forward.1} parent=0 // pred_check_branch
    %24 = sbr.rel (0) target = $region21
  $region20: #{deepfm_forward.1} parent=0 // pred_region
    _
  $region21: #{deepfm_forward.1} parent=0 // pred_fallthru
    _
  // Predicated region
  $region22: #{deepfm_forward.1} parent=0 // pred_check
    _
  $region23: #{deepfm_forward.1} parent=0 // pred_check_branch
    %26 = sbr.rel (0) target = $region25
  $region24: #{deepfm_forward.1} parent=0 // pred_region
    _
  $region25: #{deepfm_forward.1} parent=0 // pred_fallthru
    _
  // Predicated region
  $region26: #{deepfm_forward.1} parent=0 // pred_check
    _
  $region27: #{deepfm_forward.1} parent=0 // pred_check_branch
    %28 = sbr.rel (0) target = $region29
  $region28: #{deepfm_forward.1} parent=0 // pred_region
    _
  $region29: #{deepfm_forward.1} parent=0 // pred_fallthru
    _
  // Predicated region
  $region30: #{deepfm_forward.1} parent=0 // pred_check
    _
  $region31: #{deepfm_forward.1} parent=0 // pred_check_branch
    %30 = sbr.rel (0) target = $region33
  $region32: #{deepfm_forward.1} parent=0 // pred_region
    _
  $region33: #{deepfm_forward.1} parent=0 // pred_fallthru
    _
  // Predicated region
  $region34: #{deepfm_forward.1} parent=0 // pred_check
    _
  $region35: #{deepfm_forward.1} parent=0 // pred_check_branch
    %32 = sbr.rel (0) target = $region37
  $region36: #{deepfm_forward.1} parent=0 // pred_region
    _
  $region37: #{deepfm_forward.1} parent=0 // pred_fallthru
    _
  %v33 = vld [vmem:[%s0] sm:$0x7]
  %v34 = vld [vmem:[%s1] sm:$0xff]
  %v35 = vld [vmem:[%s1 + $0x8] sm:$0xff]
  %v36 = vlaneseq
  %v37 = vshrl.u32 %v36, 7
  %v38 = vadd.s32 %v37, 8
  %v39 = vadd.s32 %v37, 16
  %v40 = vadd.s32 %v37, 24
  %v41 = vadd.s32 %v37, 32
  %v42 = vadd.s32 %v37, 40
  %v43 = vadd.s32 %v37, 48
  %v44 = vadd.s32 %v37, 56
  %v45 = vperm.slane %v33, 0
  %vm46 = vcmp.eq.s32.totalorder %v37, %v45
  %vm47 = vcmp.eq.s32.totalorder %v38, %v45
  %vm48 = vcmp.eq.s32.totalorder %v39, %v45
  %vm49 = vcmp.eq.s32.totalorder %v40, %v45
  %vm50 = vcmp.eq.s32.totalorder %v41, %v45
  %vm51 = vcmp.eq.s32.totalorder %v42, %v45
  %vm52 = vcmp.eq.s32.totalorder %v43, %v45
  %vm53 = vcmp.eq.s32.totalorder %v44, %v45
  %v54 = vsel %vm46, 1, 0
  %v55 = vsel %vm47, 1, 0
  %v56 = vsel %vm48, 1, 0
  %v57 = vsel %vm49, 1, 0
  %v58 = vsel %vm50, 1, 0
  %v59 = vsel %vm51, 1, 0
  %v60 = vsel %vm52, 1, 0
  %v61 = vsel %vm53, 1, 0
  %v62 = vcvt.s32.f32 %v54
  %v63 = vcvt.s32.f32 %v55
  %v64 = vcvt.s32.f32 %v56
  %v65 = vcvt.s32.f32 %v57
  %v66 = vcvt.s32.f32 %v58
  %v67 = vcvt.s32.f32 %v59
  %v68 = vcvt.s32.f32 %v60
  %v69 = vcvt.s32.f32 %v61
  %v70 = vadd.f32 %v62, 0.0
  %v71 = vadd.f32 %v63, 0.0
  %v72 = vadd.f32 %v64, 0.0
  %v73 = vadd.f32 %v65, 0.0
  %v74 = vadd.f32 %v66, 0.0
  %v75 = vadd.f32 %v67, 0.0
  %v76 = vadd.f32 %v68, 0.0
  %v77 = vadd.f32 %v69, 0.0
  %vm78 = vcmask 490496
  %v80 = vsel %vm78, %v34, 0
  %v83 = vsel %vm78, %v35, 0
  %vm85 = vcmask 1043456
  %v87 = vsel %vm85, %v69, 0
  %89 = vmatpush.msra.mxu0 0.0
  %90 = vmatpush.msra.mxu0 0.0
  %91 = vmatpush.msra.mxu0 0.0
  %92 = vmatpush.msra.mxu0 0.0
  %93 = vmatpush.msra.mxu0 0.0
  %94 = vmatpush.msra.mxu0 0.0
  %95 = vmatpush.msra.mxu0 0.0
  %96 = vmatpush.msra.mxu0 0.0
  %97 = vmatpush.msra.mxu0 %v87
  %98 = vmatpush.msra.mxu0 %v68
  %99 = vmatpush.msra.mxu0 %v67
  %100 = vmatpush.msra.mxu0 %v66
  %101 = vmatpush.msra.mxu0 %v65
  %102 = vmatpush.msra.mxu0 %v64
  %103 = vmatpush.msra.mxu0 %v63
  %104 = vmatpush.msra.mxu0 %v62
  %105 = vmatmul.f32.gmra.mxu0 %v80
  %v106 = vpop.f32.mrf.mxu0
  %v107 = vadd.f32 0.0, %v106
  %108 = vmatmul.f32.gmra.mxu0 %v83
  %v109 = vpop.f32.mrf.mxu0
  %v110 = vadd.f32 0.0, %v109
  %111 = vdwg.mxu0
  %v112 = vperm.slane %v33, 1
  %vm113 = vcmp.eq.s32.totalorder %v37, %v112
  %vm114 = vcmp.eq.s32.totalorder %v38, %v112
  %vm115 = vcmp.eq.s32.totalorder %v39, %v112
  %vm116 = vcmp.eq.s32.totalorder %v40, %v112
  %vm117 = vcmp.eq.s32.totalorder %v41, %v112
  %vm118 = vcmp.eq.s32.totalorder %v42, %v112
  %vm119 = vcmp.eq.s32.totalorder %v43, %v112
  %vm120 = vcmp.eq.s32.totalorder %v44, %v112
  %v121 = vsel %vm113, 1, 0
  %v122 = vsel %vm114, 1, 0
  %v123 = vsel %vm115, 1, 0
  %v124 = vsel %vm116, 1, 0
  %v125 = vsel %vm117, 1, 0
  %v126 = vsel %vm118, 1, 0
  %v127 = vsel %vm119, 1, 0
  %v128 = vsel %vm120, 1, 0
  %v129 = vcvt.s32.f32 %v121
  %v130 = vcvt.s32.f32 %v122
  %v131 = vcvt.s32.f32 %v123
  %v132 = vcvt.s32.f32 %v124
  %v133 = vcvt.s32.f32 %v125
  %v134 = vcvt.s32.f32 %v126
  %v135 = vcvt.s32.f32 %v127
  %v136 = vcvt.s32.f32 %v128
  %v137 = vadd.f32 %v70, %v129
  %v138 = vadd.f32 %v71, %v130
  %v139 = vadd.f32 %v72, %v131
  %v140 = vadd.f32 %v73, %v132
  %v141 = vadd.f32 %v74, %v133
  %v142 = vadd.f32 %v75, %v134
  %v143 = vadd.f32 %v76, %v135
  %v144 = vadd.f32 %v77, %v136
  %v146 = vsel %vm85, %v136, 0
  %148 = vmatpush.msra.mxu0 0.0
  %149 = vmatpush.msra.mxu0 0.0
  %150 = vmatpush.msra.mxu0 0.0
  %151 = vmatpush.msra.mxu0 0.0
  %152 = vmatpush.msra.mxu0 0.0
  %153 = vmatpush.msra.mxu0 0.0
  %154 = vmatpush.msra.mxu0 0.0
  %155 = vmatpush.msra.mxu0 0.0
  %156 = vmatpush.msra.mxu0 %v146
  %157 = vmatpush.msra.mxu0 %v135
  %158 = vmatpush.msra.mxu0 %v134
  %159 = vmatpush.msra.mxu0 %v133
  %160 = vmatpush.msra.mxu0 %v132
  %161 = vmatpush.msra.mxu0 %v131
  %162 = vmatpush.msra.mxu0 %v130
  %163 = vmatpush.msra.mxu0 %v129
  %164 = vmatmul.f32.gmra.mxu0 %v80
  %v165 = vpop.f32.mrf.mxu0
  %v166 = vadd.f32 0.0, %v165
  %167 = vmatmul.f32.gmra.mxu0 %v83
  %v168 = vpop.f32.mrf.mxu0
  %v169 = vadd.f32 0.0, %v168
  %170 = vdwg.mxu0
  %v171 = vperm.slane %v33, 2
  %vm172 = vcmp.eq.s32.totalorder %v37, %v171
  %vm173 = vcmp.eq.s32.totalorder %v38, %v171
  %vm174 = vcmp.eq.s32.totalorder %v39, %v171
  %vm175 = vcmp.eq.s32.totalorder %v40, %v171
  %vm176 = vcmp.eq.s32.totalorder %v41, %v171
  %vm177 = vcmp.eq.s32.totalorder %v42, %v171
  %vm178 = vcmp.eq.s32.totalorder %v43, %v171
  %vm179 = vcmp.eq.s32.totalorder %v44, %v171
  %v180 = vsel %vm172, 1, 0
  %v181 = vsel %vm173, 1, 0
  %v182 = vsel %vm174, 1, 0
  %v183 = vsel %vm175, 1, 0
  %v184 = vsel %vm176, 1, 0
  %v185 = vsel %vm177, 1, 0
  %v186 = vsel %vm178, 1, 0
  %v187 = vsel %vm179, 1, 0
  %v188 = vcvt.s32.f32 %v180
  %v189 = vcvt.s32.f32 %v181
  %v190 = vcvt.s32.f32 %v182
  %v191 = vcvt.s32.f32 %v183
  %v192 = vcvt.s32.f32 %v184
  %v193 = vcvt.s32.f32 %v185
  %v194 = vcvt.s32.f32 %v186
  %v195 = vcvt.s32.f32 %v187
  %v196 = vadd.f32 %v137, %v188
  %v197 = vadd.f32 %v138, %v189
  %v198 = vadd.f32 %v139, %v190
  %v199 = vadd.f32 %v140, %v191
  %v200 = vadd.f32 %v141, %v192
  %v201 = vadd.f32 %v142, %v193
  %v202 = vadd.f32 %v143, %v194
  %v203 = vadd.f32 %v144, %v195
  %v205 = vsel %vm85, %v195, 0
  %207 = vmatpush.msra.mxu0 0.0
  %208 = vmatpush.msra.mxu0 0.0
  %209 = vmatpush.msra.mxu0 0.0
  %210 = vmatpush.msra.mxu0 0.0
  %211 = vmatpush.msra.mxu0 0.0
  %212 = vmatpush.msra.mxu0 0.0
  %213 = vmatpush.msra.mxu0 0.0
  %214 = vmatpush.msra.mxu0 0.0
  %215 = vmatpush.msra.mxu0 %v205
  %216 = vmatpush.msra.mxu0 %v194
  %217 = vmatpush.msra.mxu0 %v193
  %218 = vmatpush.msra.mxu0 %v192
  %219 = vmatpush.msra.mxu0 %v191
  %220 = vmatpush.msra.mxu0 %v190
  %221 = vmatpush.msra.mxu0 %v189
  %222 = vmatpush.msra.mxu0 %v188
  %223 = vmatmul.f32.gmra.mxu0 %v80
  %v224 = vpop.f32.mrf.mxu0
  %v225 = vadd.f32 0.0, %v224
  %226 = vmatmul.f32.gmra.mxu0 %v83
  %v227 = vpop.f32.mrf.mxu0
  %v228 = vadd.f32 0.0, %v227
  %229 = vdwg.mxu0
  %v230 = vld [vmem:[%s2] sm:$0xff]
  %v231 = vld [vmem:[%s2 + $0x8] sm:$0xff]
  %v232 = vld [vmem:[%s2 + $0x10] sm:$0xff]
  %v233 = vld [vmem:[%s2 + $0x18] sm:$0xff]
  %v234 = vld [vmem:[%s2 + $0x20] sm:$0xff]
  %v235 = vld [vmem:[%s2 + $0x28] sm:$0xff]
  %v236 = vld [vmem:[%s2 + $0x30] sm:$0xff]
  %v237 = vld [vmem:[%s2 + $0x38] sm:$0xf]
  %239 = vset.pattern.permute.xlu0 0
  %240 = vperm.xlu0 %239, %v230
  %v241 = vpop.permute.xlu0 %240
  %244 = vset.pattern.permute.xlu0 0
  %245 = vperm.xlu0 %244, %v231
  %v246 = vpop.permute.xlu0 %245
  %249 = vset.pattern.permute.xlu0 0
  %250 = vperm.xlu0 %249, %v232
  %v251 = vpop.permute.xlu0 %250
  %254 = vset.pattern.permute.xlu0 0
  %255 = vperm.xlu0 %254, %v233
  %v256 = vpop.permute.xlu0 %255
  %259 = vset.pattern.permute.xlu0 0
  %260 = vperm.xlu0 %259, %v234
  %v261 = vpop.permute.xlu0 %260
  %264 = vset.pattern.permute.xlu0 0
  %265 = vperm.xlu0 %264, %v235
  %v266 = vpop.permute.xlu0 %265
  %269 = vset.pattern.permute.xlu0 0
  %270 = vperm.xlu0 %269, %v236
  %v271 = vpop.permute.xlu0 %270
  %274 = vset.pattern.permute.xlu0 0
  %275 = vperm.xlu0 %274, %v237
  %v276 = vpop.permute.xlu0 %275
  %v278 = vmul.f32 %v241, %v196
  %v279 = vmul.f32 %v246, %v197
  %v280 = vmul.f32 %v251, %v198
  %v281 = vmul.f32 %v256, %v199
  %v282 = vmul.f32 %v261, %v200
  %v283 = vmul.f32 %v266, %v201
  %v284 = vmul.f32 %v271, %v202
  %v285 = vmul.f32 %v276, %v203
  %v286 = vadd.f32 %v278, %v279
  %v287 = vadd.f32 %v286, %v280
  %v288 = vadd.f32 %v287, %v281
  %v289 = vadd.f32 %v288, %v282
  %v290 = vadd.f32 %v289, %v283
  %v291 = vadd.f32 %v290, %v284
  %v292 = vsel %vm85, %v285, 0.0
  %v293 = vadd.f32 %v291, %v292
  %v294 = vrot.slane %v293, 4
  %v295 = vadd.f32 %v293, %v294
  %v296 = vrot.slane %v295, 2
  %v297 = vadd.f32 %v295, %v296
  %v298 = vrot.slane %v297, 1
  %v299 = vadd.f32 %v297, %v298
  %v300 = vadd.f32 %v107, %v166
  %v301 = vadd.f32 %v110, %v169
  %v302 = vadd.f32 %v300, %v225
  %v303 = vadd.f32 %v301, %v228
  %v304 = vmul.f32 %v107, %v107
  %v305 = vmul.f32 %v110, %v110
  %v306 = vmul.f32 %v166, %v166
  %v307 = vmul.f32 %v169, %v169
  %v308 = vmul.f32 %v225, %v225
  %v309 = vmul.f32 %v228, %v228
  %v310 = vadd.f32 %v304, %v306
  %v311 = vadd.f32 %v305, %v307
  %v312 = vadd.f32 %v310, %v308
  %v313 = vadd.f32 %v311, %v309
  %v314 = vmul.f32 %v302, %v302
  %v315 = vmul.f32 %v303, %v303
  %v316 = vsub.f32 %v314, %v312
  %v317 = vsub.f32 %v315, %v313
  %v318 = vadd.f32 %v316, %v317
  %v319 = vrot.slane %v318, 4
  %v320 = vadd.f32 %v318, %v319
  %v321 = vrot.slane %v320, 2
  %v322 = vadd.f32 %v320, %v321
  %v323 = vrot.slane %v322, 1
  %v324 = vadd.f32 %v322, %v323
  %v325 = vmul.f32 %v324, 0.5
  %v326 = vadd.f32 %v299, %v325
  %v327 = vld [vmem:[%s3] sm:$0xff]
  %v328 = vld [vmem:[%s3 + $0x8] sm:$0xff]
  %v329 = vld [vmem:[%s3 + $0x10] sm:$0xff]
  %v330 = vld [vmem:[%s3 + $0x18] sm:$0xff]
  %v331 = vld [vmem:[%s4] sm:$0xff]
  %v332 = vld [vmem:[%s4 + $0x8] sm:$0xff]
  %v333 = vld [vmem:[%s4 + $0x10] sm:$0xff]
  %v334 = vld [vmem:[%s4 + $0x18] sm:$0xff]
  %336 = vset.pattern.permute.xlu0 0
  %337 = vperm.xlu0 %336, %v331
  %v338 = vpop.permute.xlu0 %337
  %341 = vset.pattern.permute.xlu0 0
  %342 = vperm.xlu0 %341, %v332
  %v343 = vpop.permute.xlu0 %342
  %346 = vset.pattern.permute.xlu0 0
  %347 = vperm.xlu0 %346, %v333
  %v348 = vpop.permute.xlu0 %347
  %351 = vset.pattern.permute.xlu0 0
  %352 = vperm.xlu0 %351, %v334
  %v353 = vpop.permute.xlu0 %352
  %vm355 = vcmask 392192
  %v357 = vsel %vm355, %v327, 0
  %v360 = vsel %vm355, %v328, 0
  %v363 = vsel %vm355, %v329, 0
  %v366 = vsel %vm355, %v330, 0
  %368 = vmatpush.msra.mxu0 0.0
  %369 = vmatpush.msra.mxu0 0.0
  %370 = vmatpush.msra.mxu0 0.0
  %371 = vmatpush.msra.mxu0 0.0
  %372 = vmatpush.msra.mxu0 0.0
  %373 = vmatpush.msra.mxu0 0.0
  %374 = vmatpush.msra.mxu0 0.0
  %375 = vmatpush.msra.mxu0 0.0
  %376 = vmatpush.msra.mxu0 0.0
  %377 = vmatpush.msra.mxu0 0.0
  %378 = vmatpush.msra.mxu0 %v228
  %379 = vmatpush.msra.mxu0 %v225
  %380 = vmatpush.msra.mxu0 %v169
  %381 = vmatpush.msra.mxu0 %v166
  %382 = vmatpush.msra.mxu0 %v110
  %383 = vmatpush.msra.mxu0 %v107
  %384 = vmatmul.f32.gmra.mxu0 %v357
  %v385 = vpop.f32.mrf.mxu0
  %v386 = vadd.f32 %v338, %v385
  %387 = vmatmul.f32.gmra.mxu0 %v360
  %v388 = vpop.f32.mrf.mxu0
  %v389 = vadd.f32 %v343, %v388
  %390 = vmatmul.f32.gmra.mxu0 %v363
  %v391 = vpop.f32.mrf.mxu0
  %v392 = vadd.f32 %v348, %v391
  %393 = vmatmul.f32.gmra.mxu0 %v366
  %v394 = vpop.f32.mrf.mxu0
  %v395 = vadd.f32 %v353, %v394
  %396 = vdwg.mxu0
  %v397 = vmax.f32 %v386, 0.0
  %v398 = vmax.f32 %v389, 0.0
  %v399 = vmax.f32 %v392, 0.0
  %v400 = vmax.f32 %v395, 0.0
  %v401 = vld [vmem:[%s5] sm:$0xff]
  %v402 = vld [vmem:[%s5 + $0x8] sm:$0xff]
  %v403 = vld [vmem:[%s6] sm:$0xff]
  %v404 = vld [vmem:[%s6 + $0x8] sm:$0xff]
  %406 = vset.pattern.permute.xlu0 0
  %407 = vperm.xlu0 %406, %v403
  %v408 = vpop.permute.xlu0 %407
  %411 = vset.pattern.permute.xlu0 0
  %412 = vperm.xlu0 %411, %v404
  %v413 = vpop.permute.xlu0 %412
  %vm415 = vcmask 261120
  %v417 = vsel %vm415, %v401, 0
  %v420 = vsel %vm415, %v402, 0
  %422 = vmatpush.msra.mxu0 0.0
  %423 = vmatpush.msra.mxu0 0.0
  %424 = vmatpush.msra.mxu0 0.0
  %425 = vmatpush.msra.mxu0 0.0
  %426 = vmatpush.msra.mxu0 0.0
  %427 = vmatpush.msra.mxu0 0.0
  %428 = vmatpush.msra.mxu0 0.0
  %429 = vmatpush.msra.mxu0 0.0
  %430 = vmatpush.msra.mxu0 0.0
  %431 = vmatpush.msra.mxu0 0.0
  %432 = vmatpush.msra.mxu0 0.0
  %433 = vmatpush.msra.mxu0 0.0
  %434 = vmatpush.msra.mxu0 %v400
  %435 = vmatpush.msra.mxu0 %v399
  %436 = vmatpush.msra.mxu0 %v398
  %437 = vmatpush.msra.mxu0 %v397
  %438 = vmatmul.f32.gmra.mxu0 %v417
  %v439 = vpop.f32.mrf.mxu0
  %v440 = vadd.f32 %v408, %v439
  %441 = vmatmul.f32.gmra.mxu0 %v420
  %v442 = vpop.f32.mrf.mxu0
  %v443 = vadd.f32 %v413, %v442
  %444 = vdwg.mxu0
  %v445 = vmax.f32 %v440, 0.0
  %v446 = vmax.f32 %v443, 0.0
  %v447 = vld [vmem:[%s7] sm:$0xff]
  %v448 = vld [vmem:[%s7 + $0x8] sm:$0xff]
  %450 = vset.pattern.permute.xlu0 0
  %451 = vperm.xlu0 %450, %v447
  %v452 = vpop.permute.xlu0 %451
  %455 = vset.pattern.permute.xlu0 0
  %456 = vperm.xlu0 %455, %v448
  %v457 = vpop.permute.xlu0 %456
  %v459 = vmul.f32 %v445, %v452
  %v460 = vmul.f32 %v446, %v457
  %v461 = vadd.f32 %v459, %v460
  %v462 = vrot.slane %v461, 4
  %v463 = vadd.f32 %v461, %v462
  %v464 = vrot.slane %v463, 2
  %v465 = vadd.f32 %v463, %v464
  %v466 = vrot.slane %v465, 1
  %v467 = vadd.f32 %v465, %v466
  %v468 = vadd.f32 %v326, %v467
  %s469 = sld [smem:[#allocation2]]
  %v470 = vstv %s469
  %v471 = vadd.f32 %v468, %v470
  %v472 = vxor.u32 %v471, 2147483648
  %v473 = vmul.f32 %v472, 1.442695
  %v474 = vpow.pop %v473
  %v475 = vadd.f32 %v474, 1.0
  %v476 = vrcp.pop %v475
  %v477 = vmul.f32 %v475, %v476
  %v478 = vsub.f32 1.0, %v477
  %v479 = vmul.f32 %v476, %v478
  %v480 = vadd.f32 %v476, %v479
  %vm481 = vweird.f32 %v475
  %vm482 = vweird.f32 %v476
  %vm483 = vmor %vm481, %vm482
  %v484 = vsel %vm483, %v476, %v480
  %v485 = vand.u32 2147483647, %v475
  %vm486 = vcmp.eq.f32.partialorder %v485, 8.507059e+37
  %v487 = vand.u32 %v475, 2147483648
  %v488 = vor.u32 1.1754944e-38, %v487
  %v489 = vsel %vm486, %v488, %v484
  %v490 = vmul.f32 1.0, %v489
  %491 = vst [vmem:[%s9] sm:$0x1] %v490
  // Predicated region
  $region38: #{deepfm_forward.1} parent=0 // pred_check
    _
  $region39: #{deepfm_forward.1} parent=0 // pred_check_branch
    %493 = sbr.rel (0) target = $region41
  $region40: #{deepfm_forward.1} parent=0 // pred_region
    _
  $region41: #{deepfm_forward.1} parent=0 // pred_fallthru
    _
  // Predicated region
  $region42: #{deepfm_forward.1} parent=0 // pred_check
    _
  $region43: #{deepfm_forward.1} parent=0 // pred_check_branch
    %495 = sbr.rel (0) target = $region45
  $region44: #{deepfm_forward.1} parent=0 // pred_region
    _
  $region45: #{deepfm_forward.1} parent=0 // pred_fallthru
    _

</llo_original>
